<compile_context>
chip_gen: v7x
topology: tpu7x:2x2x1
jax: 0.10.0
libtpu: 0.0.40
codegen_flags: <defaults>
</compile_context>

<pallas_src>
import jax
import jax.numpy as jnp
from jax.experimental import pallas as pl
from jax.experimental.pallas import tpu as pltpu

block_size = 8
n_embd = 32

_HP = 128  # lane-padded head size (multiple of 128 -> lane-dense layout)


def _head_kernel(x_ref, w_ref, o_ref):
    # x_ref: (Bb, T, C)    block of batch elements
    # w_ref: (C, 3*Hp)     fused [Wq | Wk | Wv] (transposed, lane-padded)
    # o_ref: (Bb, T, Hp)   lane-padded output (valid head dims = first H)
    Bb, T, C = x_ref.shape
    Hp = w_ref.shape[1] // 3

    # Fused QKV projection: fold (Bb, T) onto the sublane axis -> one matmul.
    x2 = x_ref[...].reshape(Bb * T, C)                               # (Bb*T, C)
    qkv = jnp.dot(x2, w_ref[...],
                  preferred_element_type=jnp.float32)                # (Bb*T, 3Hp)
    qkv = qkv.reshape(Bb, T, 3 * Hp)
    q = qkv[:, :, 0 * Hp:1 * Hp]                                     # (Bb, T, Hp)
    k = qkv[:, :, 1 * Hp:2 * Hp]
    v = qkv[:, :, 2 * Hp:3 * Hp]

    # Scores: contract the head dim directly (no explicit transpose of k).
    # Padded lanes of q/k are zero, so they do not affect the scores.
    # (NOTE: the reference applies no 1/sqrt(head_size) scaling.)
    wei = jnp.einsum('bqd,bkd->bqk', q, k,
                     preferred_element_type=jnp.float32)             # (Bb, T, T)

    # Causal (lower-triangular) mask: keep where row >= col.
    row = jax.lax.broadcasted_iota(jnp.int32, (T, T), 0)
    col = jax.lax.broadcasted_iota(jnp.int32, (T, T), 1)
    wei = jnp.where((row >= col)[None, :, :], wei, -jnp.inf)

    # Numerically stable softmax over the key axis (f32 throughout).
    wei = wei - jnp.max(wei, axis=-1, keepdims=True)
    p = jnp.exp(wei)                                                 # masked -> 0
    denom = jnp.sum(p, axis=-1, keepdims=True)
    # approx=True would use the (free) EUP vrcp slot; kept exact for the
    # 1e-5 reference tolerance.
    p = p * pl.reciprocal(denom, approx=False)

    # Attention-weighted values; padded lanes of v are zero -> padded out = 0.
    out = jnp.einsum('bqk,bkd->bqd', p, v,
                     preferred_element_type=jnp.float32)             # (Bb, T, Hp)
    o_ref[...] = out.astype(o_ref.dtype)


def head_forward(x, w_key, w_query, w_value, *, batch_block=None):
    """x: (B, T, C) float32.  w_*: (head_size, n_embd) like nn.Linear weights."""
    B, T, C = x.shape
    H = w_key.shape[0]
    Hp = _HP

    # Fused, transposed, lane-padded QKV weight: (C, 3*Hp), layout [Wq|Wk|Wv].
    w_qkv = jnp.zeros((C, 3 * Hp), x.dtype)
    w_qkv = w_qkv.at[:, 0 * Hp:0 * Hp + H].set(w_query.T)
    w_qkv = w_qkv.at[:, 1 * Hp:1 * Hp + H].set(w_key.T)
    w_qkv = w_qkv.at[:, 2 * Hp:2 * Hp + H].set(w_value.T)

    # Default: pack as many batch elements as fill up to 128 sublane rows
    # (one grid step for tiny B).  For v7x, pass batch_block <= B//2 to keep a
    # parallel grid axis across both TensorCores.
    if batch_block is None:
        batch_block = max(1, min(B, 128 // T))
    while B % batch_block:
        batch_block -= 1
    grid = (B // batch_block,)

    out_padded = pl.pallas_call(
        _head_kernel,
        out_shape=jax.ShapeDtypeStruct((B, T, Hp), x.dtype),
        grid_spec=pltpu.PrefetchScalarGridSpec(
            num_scalar_prefetch=0,
            grid=grid,
            in_specs=[
                pl.BlockSpec((batch_block, T, C), lambda b: (b, 0, 0)),
                # Constant index_map -> tile fetched once, resident across
                # all grid steps.
                pl.BlockSpec((C, 3 * Hp), lambda b: (0, 0)),
            ],
            out_specs=pl.BlockSpec((batch_block, T, Hp), lambda b: (b, 0, 0)),
        ),
        compiler_params=pltpu.CompilerParams(
            dimension_semantics=("parallel",)),
    )(x, w_qkv)

    # Drop the lane padding (cheap XLA slice outside the kernel).
    return out_padded[..., :H]


def head_reference(x, w_key, w_query, w_value):
    """Pure-JAX reference mirroring the PyTorch forward."""
    k = x @ w_key.T
    q = x @ w_query.T
    v = x @ w_value.T
    wei = q @ jnp.swapaxes(k, -2, -1)
    T = x.shape[1]
    tril = jnp.tril(jnp.ones((T, T)))
    wei = jnp.where(tril == 0, -jnp.inf, wei)
    wei = jax.nn.softmax(wei, axis=-1)
    return wei @ v


if __name__ == "__main__":
    key = jax.random.PRNGKey(0)
    B, T, C = 2, block_size, n_embd
    head_size = 16

    kx, kk, kq, kv = jax.random.split(key, 4)
    x = jax.random.normal(kx, (B, T, C), dtype=jnp.float32)
    # nn.Linear-style weights: shape (out_features, in_features)
    bound = 1.0 / (C ** 0.5)
    w_key_p = jax.random.uniform(kk, (head_size, C), jnp.float32, -bound, bound)
    w_query_p = jax.random.uniform(kq, (head_size, C), jnp.float32, -bound, bound)
    w_value_p = jax.random.uniform(kv, (head_size, C), jnp.float32, -bound, bound)

    out = head_forward(x, w_key_p, w_query_p, w_value_p)
    out = jax.block_until_ready(out)

    ref = head_reference(x, w_key_p, w_query_p, w_value_p)
    assert out.shape == (B, T, head_size)
    assert jnp.allclose(out, ref, atol=1e-5, rtol=1e-5), "mismatch vs reference"

    print("KERNEL_OK")
</pallas_src>

<mosaic_0001>
module attributes {stable_mosaic.version = 11 : i64} {
  func.func @_head_kernel(%arg0: i32, %arg1: memref<2x8x32xf32, #tpu.memory_space<vmem>>, %arg2: memref<32x384xf32, #tpu.memory_space<vmem>>, %arg3: memref<2x8x128xf32, #tpu.memory_space<vmem>>) attributes {dimension_semantics = [#tpu.dimension_semantics<parallel>], iteration_bounds = array<i64: 1>, scalar_prefetch = 0 : i64, scratch_operands = 0 : i64, tpu.core_type = #tpu.core_type<tc>, window_params = [{transform_indices = @transform_0, window_bounds = array<i64: 2, 8, 32>}, {pipeline_mode = #tpu.pipeline_mode<synchronous>, transform_indices = @transform_1, window_bounds = array<i64: 32, 384>}, {transform_indices = @transform_2, window_bounds = array<i64: 2, 8, 128>}]} {
    %c0 = arith.constant 0 : index
    %c0_0 = arith.constant 0 : index
    %c0_1 = arith.constant 0 : index
    %0 = vector.load %arg1[%c0, %c0_0, %c0_1] : memref<2x8x32xf32, #tpu.memory_space<vmem>>, vector<2x8x32xf32>
    %1 = vector.shape_cast %0 : vector<2x8x32xf32> to vector<16x32xf32>
    %c0_2 = arith.constant 0 : index
    %c0_3 = arith.constant 0 : index
    %2 = vector.load %arg2[%c0_2, %c0_3] : memref<32x384xf32, #tpu.memory_space<vmem>>, vector<32x384xf32>
    %cst = arith.constant dense<0.000000e+00> : vector<16x384xf32>
    %3 = tpu.matmul %1, %2, %cst {dimension_numbers = #tpu.dot_dimension_numbers<[1], [0], [0], [1], [0, 0, 1, 1], [], []>} : vector<16x32xf32>, vector<32x384xf32>, vector<16x384xf32> -> vector<16x384xf32>
    %4 = vector.shape_cast %3 : vector<16x384xf32> to vector<2x8x384xf32>
    %5 = vector.extract_strided_slice %4 {offsets = [0, 0, 0], sizes = [2, 8, 128], strides = [1, 1, 1]} : vector<2x8x384xf32> to vector<2x8x128xf32>
    %6 = vector.extract_strided_slice %4 {offsets = [0, 0, 128], sizes = [2, 8, 128], strides = [1, 1, 1]} : vector<2x8x384xf32> to vector<2x8x128xf32>
    %7 = vector.extract_strided_slice %4 {offsets = [0, 0, 256], sizes = [2, 8, 128], strides = [1, 1, 1]} : vector<2x8x384xf32> to vector<2x8x128xf32>
    "tpu.trace_start"() <{level = 10 : i32, message = "bqd,bkd->bqk"}> : () -> ()
    %cst_4 = arith.constant dense<0.000000e+00> : vector<2x8x8xf32>
    %8 = tpu.matmul %5, %6, %cst_4 {dimension_numbers = #tpu.dot_dimension_numbers<[2], [2], [1], [1], [0, 0, 0, 1, 1, 1], [0], [0]>} : vector<2x8x128xf32>, vector<2x8x128xf32>, vector<2x8x8xf32> -> vector<2x8x8xf32>
    "tpu.trace_stop"() : () -> ()
    %9 = tpu.iota {dimensions = array<i32: 0>} : vector<8x8xi32>
    %10 = tpu.iota {dimensions = array<i32: 1>} : vector<8x8xi32>
    %11 = arith.cmpi sge, %9, %10 : vector<8x8xi32>
    %12 = vector.shape_cast %11 : vector<8x8xi1> to vector<1x8x8xi1>
    %cst_5 = arith.constant 0xFF800000 : f32
    %13 = vector.shape_cast %12 : vector<1x8x8xi1> to vector<1x8x8xi1>
    %14 = vector.broadcast %13 : vector<1x8x8xi1> to vector<2x8x8xi1>
    %15 = vector.broadcast %cst_5 : f32 to vector<2x8x8xf32>
    %16 = arith.select %14, %8, %15 : vector<2x8x8xi1>, vector<2x8x8xf32>
    %cst_6 = arith.constant dense<0xFF800000> : vector<2x8xf32>
    %17 = vector.multi_reduction <maximumf>, %16, %cst_6 [2] : vector<2x8x8xf32> to vector<2x8xf32>
    %18 = vector.shape_cast %17 : vector<2x8xf32> to vector<2x8x1xf32>
    %19 = vector.broadcast %18 : vector<2x8x1xf32> to vector<2x8x8xf32>
    %20 = arith.subf %16, %19 : vector<2x8x8xf32>
    %21 = math.exp %20 : vector<2x8x8xf32>
    %cst_7 = arith.constant dense<0.000000e+00> : vector<2x8xf32>
    %22 = vector.multi_reduction <add>, %21, %cst_7 [2] : vector<2x8x8xf32> to vector<2x8xf32>
    %23 = vector.shape_cast %22 : vector<2x8xf32> to vector<2x8x1xf32>
    %24 = tpu.reciprocal %23 : vector<2x8x1xf32> -> vector<2x8x1xf32>
    %25 = vector.broadcast %24 : vector<2x8x1xf32> to vector<2x8x8xf32>
    %26 = arith.mulf %21, %25 : vector<2x8x8xf32>
    "tpu.trace_start"() <{level = 10 : i32, message = "bqk,bkd->bqd"}> : () -> ()
    %cst_8 = arith.constant dense<0.000000e+00> : vector<2x8x128xf32>
    %27 = tpu.matmul %26, %7, %cst_8 {dimension_numbers = #tpu.dot_dimension_numbers<[2], [1], [1], [2], [0, 0, 0, 1, 1, 2], [0], [0]>} : vector<2x8x8xf32>, vector<2x8x128xf32>, vector<2x8x128xf32> -> vector<2x8x128xf32>
    "tpu.trace_stop"() : () -> ()
    %c0_9 = arith.constant 0 : index
    %c0_10 = arith.constant 0 : index
    %c0_11 = arith.constant 0 : index
    %28 = vector.load %arg3[%c0_9, %c0_10, %c0_11] : memref<2x8x128xf32, #tpu.memory_space<vmem>>, vector<2x8x128xf32>
    tpu.vector_store %arg3[%c0_9, %c0_10, %c0_11], %27 {strides = array<i32>} : memref<2x8x128xf32, #tpu.memory_space<vmem>>, vector<2x8x128xf32>,
    return
  }
  func.func @transform_0(%arg0: i32) -> (i32, i32, i32) {
    %c0_i32 = arith.constant 0 : i32
    %c0_i32_0 = arith.constant 0 : i32
    %c0_i32_1 = arith.constant 0 : i32
    return %arg0, %c0_i32, %c0_i32_0 : i32, i32, i32
  }
  func.func @transform_1(%arg0: i32) -> (i32, i32) {
    %c0_i32 = arith.constant 0 : i32
    %c0_i32_0 = arith.constant 0 : i32
    %c0_i32_1 = arith.constant 0 : i32
    return %c0_i32, %c0_i32_0 : i32, i32
  }
  func.func @transform_2(%arg0: i32) -> (i32, i32, i32) {
    %c0_i32 = arith.constant 0 : i32
    %c0_i32_0 = arith.constant 0 : i32
    %c0_i32_1 = arith.constant 0 : i32
    return %arg0, %c0_i32, %c0_i32_0 : i32, i32, i32
  }
}

</mosaic_0001>

<llo_original>
// kernel: tpu_custom_call.1
$region0: #{tpu_custom_call.1}
  #allocation0 [shape = 'u32[]', space=smem, size = 0x4, offset = 0x4, fixed_abs, tag = 'smem constant byte address 0x4 - core index']
  #allocation1 [shape = 'u32[144,128]{1,0:T(1,128)}', space=vmem, size = 0x12000, scoped, tag = 'internal scratch']
  %s0 = inlined_call_operand.hbm [shape: f32[2,8,32], index: 0, kind: input, shape index: {}]
  %s1 = inlined_call_operand.hbm [shape: f32[32,384], index: 1, kind: input, shape index: {}]
  %s2 = inlined_call_operand.hbm [shape: f32[2,8,128], index: 2, kind: output, shape index: {}]
  %s3 = sld [smem:[#allocation0]]
  $region26: #{tpu_custom_call.1} parent=0
    _
  %s5 = ssub.s32 1, %s3
  %s6 = scalar_select 0, %s5, %s3
  $region1: #{tpu_custom_call.1} parent=0
    #allocation2 [shape = 'u8[8192]{0}', space=vmem, size = 0x2000, scoped, tag = 'input window, operand 0, single buffered']
    #allocation3 [shape = 's32[1]{0}', space=sflag, size = 0x4, scoped, tag = 'scoped memory for tpu_custom_call.1']
    #allocation4 [shape = 's32[1]{0}', space=sflag, size = 0x4, scoped, tag = 'scoped memory for tpu_custom_call.1']
    #allocation5 [shape = 'u8[49152]{0}', space=vmem, size = 0xc000, scoped, tag = 'input window, operand 1, single buffered']
    #allocation6 [shape = 's32[1]{0}', space=sflag, size = 0x4, scoped, tag = 'scoped memory for tpu_custom_call.1']
    #allocation7 [shape = 'u8[8192]{0}', space=vmem, size = 0x2000, scoped, tag = 'output window, operand 0, single buffered']
    %7 = vsyncpa [#allocation3], 0
    %8 = vsyncpa [#allocation6], 0
    %9 = vsyncpa [#allocation4], 0
    // Predicated region
    $region2: #{tpu_custom_call.1} parent=1 // pred_check
      _
    $region3: #{tpu_custom_call.1} parent=1 // pred_check_branch
      %11 = sbr.rel (0) target = $region5
    $region4: #{tpu_custom_call.1} parent=1 // pred_region
      %s13 = ssub.s32 256, 256
      %14 = vsyncadd [#allocation3], %s13
      %s15 = sshll.u32 [#allocation2], 4
      %s16 = int_to_ptr.vmem [resolvable:$true] %s15
      %21 = dma.hbm_to_vmem [thread:$0]  %s0, 256, %s16, [#allocation3], 128, 128, 8
    $region5: #{tpu_custom_call.1} parent=1 // pred_fallthru
      _
    // Predicated region
    $region6: #{tpu_custom_call.1} parent=1 // pred_check
      _
    $region7: #{tpu_custom_call.1} parent=1 // pred_check_branch
      %23 = sbr.rel (0) target = $region9
    $region8: #{tpu_custom_call.1} parent=1 // pred_region
      %s25 = ssub.s32 1536, 1536
      %26 = vsyncadd [#allocation6], %s25
      %s27 = sshll.u32 [#allocation5], 4
      %s28 = int_to_ptr.vmem [resolvable:$true] %s27
      %33 = dma.hbm_to_vmem [thread:$0]  %s1, 1536, %s28, [#allocation6], 384, 384, 24
    $region9: #{tpu_custom_call.1} parent=1 // pred_fallthru
      _
    // Predicated region
    $region10: #{tpu_custom_call.1} parent=1 // pred_check
      _
    $region11: #{tpu_custom_call.1} parent=1 // pred_check_branch
      %35 = sbr.rel (0) target = $region13
    $region12: #{tpu_custom_call.1} parent=1 // pred_region
      %36 = dma.done [#allocation3], 256
    $region13: #{tpu_custom_call.1} parent=1 // pred_fallthru
      _
    // Predicated region
    $region14: #{tpu_custom_call.1} parent=1 // pred_check
      _
    $region15: #{tpu_custom_call.1} parent=1 // pred_check_branch
      %38 = sbr.rel (0) target = $region17
    $region16: #{tpu_custom_call.1} parent=1 // pred_region
      %39 = dma.done [#allocation6], 1536
    $region17: #{tpu_custom_call.1} parent=1 // pred_fallthru
      _
    %v40 = vld [vmem:[#allocation2] sm:$0xff]
    %v41 = vld [vmem:[#allocation2 + $0x8] sm:$0xff]
    %v42 = vld [vmem:[#allocation5] sm:$0xff]
    %v43 = vld [vmem:[#allocation5 + $0x8] sm:$0xff]
    %v44 = vld [vmem:[#allocation5 + $0x10] sm:$0xff]
    %v45 = vld [vmem:[#allocation5 + $0x18] sm:$0xff]
    %v46 = vld [vmem:[#allocation5 + $0x20] sm:$0xff]
    %v47 = vld [vmem:[#allocation5 + $0x28] sm:$0xff]
    %v48 = vld [vmem:[#allocation5 + $0x30] sm:$0xff]
    %v49 = vld [vmem:[#allocation5 + $0x38] sm:$0xff]
    %v50 = vld [vmem:[#allocation5 + $0x40] sm:$0xff]
    %v51 = vld [vmem:[#allocation5 + $0x48] sm:$0xff]
    %v52 = vld [vmem:[#allocation5 + $0x50] sm:$0xff]
    %v53 = vld [vmem:[#allocation5 + $0x58] sm:$0xff]
    %vm54 = vcmask 261120
    %v56 = vsel %vm54, %v40, 0
    %v59 = vsel %vm54, %v41, 0
    %61 = vmatprep.subr.mxu0 %v43
    %62 = vmatpush1.msra.mxu0 %v42
    %63 = vmatprep.subr.mxu0 %v46
    %64 = vmatpush1.msra.mxu0 %v45
    %65 = vmatprep.subr.mxu0 %v49
    %66 = vmatpush1.msra.mxu0 %v48
    %67 = vmatprep.subr.mxu0 %v52
    %68 = vmatpush1.msra.mxu0 %v51
    %69 = vmatprep.subr.mxu0 0.0
    %70 = vmatpush1.msra.mxu0 0.0
    %71 = vmatprep.subr.mxu0 0.0
    %72 = vmatpush1.msra.mxu0 0.0
    %73 = vmatprep.subr.mxu0 0.0
    %74 = vmatpush1.msra.mxu0 0.0
    %75 = vmatprep.subr.mxu0 0.0
    %76 = vmatpush1.msra.mxu0 0.0
    %77 = vmatprep.subr.mxu0 0.0
    %78 = vmatpush1.msra.mxu0 0.0
    %79 = vmatprep.subr.mxu0 0.0
    %80 = vmatpush1.msra.mxu0 0.0
    %81 = vmatprep.subr.mxu0 0.0
    %82 = vmatpush1.msra.mxu0 0.0
    %83 = vmatprep.subr.mxu0 0.0
    %84 = vmatpush1.msra.mxu0 0.0
    %85 = vmatprep.subr.mxu0 0.0
    %86 = vmatpush1.msra.mxu0 0.0
    %87 = vmatprep.subr.mxu0 0.0
    %88 = vmatpush1.msra.mxu0 0.0
    %89 = vmatprep.subr.mxu0 0.0
    %90 = vmatpush1.msra.mxu0 0.0
    %91 = vmatprep.subr.mxu0 0.0
    %92 = vmatpush1.msra.mxu0 0.0
    %93 = vmatprep.subr.mxu0 0.0
    %94 = vmatpush1.msra.mxu0 0.0
    %95 = vmatprep.subr.mxu0 0.0
    %96 = vmatpush1.msra.mxu0 0.0
    %97 = vmatprep.subr.mxu0 0.0
    %98 = vmatpush1.msra.mxu0 0.0
    %99 = vmatprep.subr.mxu0 0.0
    %100 = vmatpush1.msra.mxu0 0.0
    %101 = vmatprep.subr.mxu0 0.0
    %102 = vmatpush1.msra.mxu0 0.0
    %103 = vmatprep.subr.mxu0 0.0
    %104 = vmatpush1.msra.mxu0 0.0
    %105 = vmatprep.subr.mxu0 0.0
    %106 = vmatpush1.msra.mxu0 0.0
    %107 = vmatprep.subr.mxu0 0.0
    %108 = vmatpush1.msra.mxu0 0.0
    %109 = vmatprep.subr.mxu0 0.0
    %110 = vmatpush1.msra.mxu0 0.0
    %111 = vmatprep.subr.mxu0 0.0
    %112 = vmatpush1.msra.mxu0 0.0
    %113 = vmatprep.subr.mxu0 0.0
    %114 = vmatpush1.msra.mxu0 0.0
    %115 = vmatprep.subr.mxu0 0.0
    %116 = vmatpush1.msra.mxu0 0.0
    %117 = vmatprep.subr.mxu0 0.0
    %118 = vmatpush1.msra.mxu0 0.0
    %119 = vmatprep.subr.mxu0 0.0
    %120 = vmatpush1.msra.mxu0 0.0
    %121 = vmatprep.subr.mxu0 0.0
    %122 = vmatpush1.msra.mxu0 0.0
    %123 = vmatprep.subr.mxu0 0.0
    %124 = vmatpush1.msra.mxu0 0.0
    %125 = vmatprep.mubr.f32.mxu0 0.0
    %126 = vmatmul.mubr.f32.gmra.mrb[0].mxu0 %v56
    %v127 = vpop.f32.mrb[0].mxu0
    %v128 = vadd.f32 0.0, %v127
    %v129 = vpop.f32.mrb[0].mxu0
    %v130 = vadd.f32 0.0, %v129
    %131 = vmatprep.mubr.f32.mxu0 0.0
    %132 = vmatmul.mubr.f32.gmra.mrb[0].mxu0 %v59
    %v133 = vpop.f32.mrb[0].mxu0
    %v134 = vadd.f32 0.0, %v133
    %v135 = vpop.f32.mrb[0].mxu0
    %v136 = vadd.f32 0.0, %v135
    %137 = vdwg.mxu0
    %138 = vmatprep.subr.mxu0 0.0
    %139 = vmatpush1.msra.mxu0 %v44
    %140 = vmatprep.subr.mxu0 0.0
    %141 = vmatpush1.msra.mxu0 %v47
    %142 = vmatprep.subr.mxu0 0.0
    %143 = vmatpush1.msra.mxu0 %v50
    %144 = vmatprep.subr.mxu0 0.0
    %145 = vmatpush1.msra.mxu0 %v53
    %146 = vmatprep.subr.mxu0 0.0
    %147 = vmatpush1.msra.mxu0 0.0
    %148 = vmatprep.subr.mxu0 0.0
    %149 = vmatpush1.msra.mxu0 0.0
    %150 = vmatprep.subr.mxu0 0.0
    %151 = vmatpush1.msra.mxu0 0.0
    %152 = vmatprep.subr.mxu0 0.0
    %153 = vmatpush1.msra.mxu0 0.0
    %154 = vmatprep.subr.mxu0 0.0
    %155 = vmatpush1.msra.mxu0 0.0
    %156 = vmatprep.subr.mxu0 0.0
    %157 = vmatpush1.msra.mxu0 0.0
    %158 = vmatprep.subr.mxu0 0.0
    %159 = vmatpush1.msra.mxu0 0.0
    %160 = vmatprep.subr.mxu0 0.0
    %161 = vmatpush1.msra.mxu0 0.0
    %162 = vmatprep.subr.mxu0 0.0
    %163 = vmatpush1.msra.mxu0 0.0
    %164 = vmatprep.subr.mxu0 0.0
    %165 = vmatpush1.msra.mxu0 0.0
    %166 = vmatprep.subr.mxu0 0.0
    %167 = vmatpush1.msra.mxu0 0.0
    %168 = vmatprep.subr.mxu0 0.0
    %169 = vmatpush1.msra.mxu0 0.0
    %170 = vmatprep.subr.mxu0 0.0
    %171 = vmatpush1.msra.mxu0 0.0
    %172 = vmatprep.subr.mxu0 0.0
    %173 = vmatpush1.msra.mxu0 0.0
    %174 = vmatprep.subr.mxu0 0.0
    %175 = vmatpush1.msra.mxu0 0.0
    %176 = vmatprep.subr.mxu0 0.0
    %177 = vmatpush1.msra.mxu0 0.0
    %178 = vmatprep.subr.mxu0 0.0
    %179 = vmatpush1.msra.mxu0 0.0
    %180 = vmatprep.subr.mxu0 0.0
    %181 = vmatpush1.msra.mxu0 0.0
    %182 = vmatprep.subr.mxu0 0.0
    %183 = vmatpush1.msra.mxu0 0.0
    %184 = vmatprep.subr.mxu0 0.0
    %185 = vmatpush1.msra.mxu0 0.0
    %186 = vmatprep.subr.mxu0 0.0
    %187 = vmatpush1.msra.mxu0 0.0
    %188 = vmatprep.subr.mxu0 0.0
    %189 = vmatpush1.msra.mxu0 0.0
    %190 = vmatprep.subr.mxu0 0.0
    %191 = vmatpush1.msra.mxu0 0.0
    %192 = vmatprep.subr.mxu0 0.0
    %193 = vmatpush1.msra.mxu0 0.0
    %194 = vmatprep.subr.mxu0 0.0
    %195 = vmatpush1.msra.mxu0 0.0
    %196 = vmatprep.subr.mxu0 0.0
    %197 = vmatpush1.msra.mxu0 0.0
    %198 = vmatprep.subr.mxu0 0.0
    %199 = vmatpush1.msra.mxu0 0.0
    %200 = vmatprep.subr.mxu0 0.0
    %201 = vmatpush1.msra.mxu0 0.0
    %202 = vmatprep.mubr.f32.mxu0 0.0
    %203 = vmatmul.mubr.f32.gmra.mrb[0].mxu0 %v56
    %v204 = vpop.f32.mrb[0].mxu0
    %v205 = vadd.f32 0.0, %v204
    %v206 = vpop.f32.mrb[0].mxu0
    %207 = vmatprep.mubr.f32.mxu0 0.0
    %208 = vmatmul.mubr.f32.gmra.mrb[0].mxu0 %v59
    %v209 = vpop.f32.mrb[0].mxu0
    %v210 = vadd.f32 0.0, %v209
    %v211 = vpop.f32.mrb[0].mxu0
    %212 = vdwg.mxu0
    %213 = vmatprep.subr.mxu0 0.0
    %214 = vmatpush1.xpose.msra.mxu0 %v130
    %215 = vmatprep.subr.mxu0 0.0
    %216 = vmatpush1.xpose.msra.mxu0 0.0
    %217 = vmatprep.subr.mxu0 0.0
    %218 = vmatpush1.xpose.msra.mxu0 0.0
    %219 = vmatprep.subr.mxu0 0.0
    %220 = vmatpush1.xpose.msra.mxu0 0.0
    %221 = vmatprep.subr.mxu0 0.0
    %222 = vmatpush1.xpose.msra.mxu0 0.0
    %223 = vmatprep.subr.mxu0 0.0
    %224 = vmatpush1.xpose.msra.mxu0 0.0
    %225 = vmatprep.subr.mxu0 0.0
    %226 = vmatpush1.xpose.msra.mxu0 0.0
    %227 = vmatprep.subr.mxu0 0.0
    %228 = vmatpush1.xpose.msra.mxu0 0.0
    %229 = vmatprep.subr.mxu0 0.0
    %230 = vmatpush1.xpose.msra.mxu0 0.0
    %231 = vmatprep.subr.mxu0 0.0
    %232 = vmatpush1.xpose.msra.mxu0 0.0
    %233 = vmatprep.subr.mxu0 0.0
    %234 = vmatpush1.xpose.msra.mxu0 0.0
    %235 = vmatprep.subr.mxu0 0.0
    %236 = vmatpush1.xpose.msra.mxu0 0.0
    %237 = vmatprep.subr.mxu0 0.0
    %238 = vmatpush1.xpose.msra.mxu0 0.0
    %239 = vmatprep.subr.mxu0 0.0
    %240 = vmatpush1.xpose.msra.mxu0 0.0
    %241 = vmatprep.subr.mxu0 0.0
    %242 = vmatpush1.xpose.msra.mxu0 0.0
    %243 = vmatprep.subr.mxu0 0.0
    %244 = vmatpush1.xpose.msra.mxu0 0.0
    %245 = vmatprep.subr.mxu0 0.0
    %246 = vmatpush1.xpose.msra.mxu0 0.0
    %247 = vmatprep.subr.mxu0 0.0
    %248 = vmatpush1.xpose.msra.mxu0 0.0
    %249 = vmatprep.subr.mxu0 0.0
    %250 = vmatpush1.xpose.msra.mxu0 0.0
    %251 = vmatprep.subr.mxu0 0.0
    %252 = vmatpush1.xpose.msra.mxu0 0.0
    %253 = vmatprep.subr.mxu0 0.0
    %254 = vmatpush1.xpose.msra.mxu0 0.0
    %255 = vmatprep.subr.mxu0 0.0
    %256 = vmatpush1.xpose.msra.mxu0 0.0
    %257 = vmatprep.subr.mxu0 0.0
    %258 = vmatpush1.xpose.msra.mxu0 0.0
    %259 = vmatprep.subr.mxu0 0.0
    %260 = vmatpush1.xpose.msra.mxu0 0.0
    %261 = vmatprep.subr.mxu0 0.0
    %262 = vmatpush1.xpose.msra.mxu0 0.0
    %263 = vmatprep.subr.mxu0 0.0
    %264 = vmatpush1.xpose.msra.mxu0 0.0
    %265 = vmatprep.subr.mxu0 0.0
    %266 = vmatpush1.xpose.msra.mxu0 0.0
    %267 = vmatprep.subr.mxu0 0.0
    %268 = vmatpush1.xpose.msra.mxu0 0.0
    %269 = vmatprep.subr.mxu0 0.0
    %270 = vmatpush1.xpose.msra.mxu0 0.0
    %271 = vmatprep.subr.mxu0 0.0
    %272 = vmatpush1.xpose.msra.mxu0 0.0
    %273 = vmatprep.subr.mxu0 0.0
    %274 = vmatpush1.xpose.msra.mxu0 0.0
    %275 = vmatprep.subr.mxu0 0.0
    %276 = vmatpush1.xpose.msra.mxu0 0.0
    %277 = vmatprep.mubr.f32.mxu0 0.0
    %278 = vmatmul.mubr.f32.gmra.mrb[0].mxu0 %v128
    %v279 = vpop.f32.mrb[0].mxu0
    %v280 = vadd.f32 0.0, %v279
    %v281 = vpop.f32.mrb[0].mxu0
    %282 = vdwg.mxu0
    %283 = vmatprep.subr.mxu0 0.0
    %284 = vmatpush1.xpose.msra.mxu0 %v136
    %285 = vmatprep.subr.mxu0 0.0
    %286 = vmatpush1.xpose.msra.mxu0 0.0
    %287 = vmatprep.subr.mxu0 0.0
    %288 = vmatpush1.xpose.msra.mxu0 0.0
    %289 = vmatprep.subr.mxu0 0.0
    %290 = vmatpush1.xpose.msra.mxu0 0.0
    %291 = vmatprep.subr.mxu0 0.0
    %292 = vmatpush1.xpose.msra.mxu0 0.0
    %293 = vmatprep.subr.mxu0 0.0
    %294 = vmatpush1.xpose.msra.mxu0 0.0
    %295 = vmatprep.subr.mxu0 0.0
    %296 = vmatpush1.xpose.msra.mxu0 0.0
    %297 = vmatprep.subr.mxu0 0.0
    %298 = vmatpush1.xpose.msra.mxu0 0.0
    %299 = vmatprep.subr.mxu0 0.0
    %300 = vmatpush1.xpose.msra.mxu0 0.0
    %301 = vmatprep.subr.mxu0 0.0
    %302 = vmatpush1.xpose.msra.mxu0 0.0
    %303 = vmatprep.subr.mxu0 0.0
    %304 = vmatpush1.xpose.msra.mxu0 0.0
    %305 = vmatprep.subr.mxu0 0.0
    %306 = vmatpush1.xpose.msra.mxu0 0.0
    %307 = vmatprep.subr.mxu0 0.0
    %308 = vmatpush1.xpose.msra.mxu0 0.0
    %309 = vmatprep.subr.mxu0 0.0
    %310 = vmatpush1.xpose.msra.mxu0 0.0
    %311 = vmatprep.subr.mxu0 0.0
    %312 = vmatpush1.xpose.msra.mxu0 0.0
    %313 = vmatprep.subr.mxu0 0.0
    %314 = vmatpush1.xpose.msra.mxu0 0.0
    %315 = vmatprep.subr.mxu0 0.0
    %316 = vmatpush1.xpose.msra.mxu0 0.0
    %317 = vmatprep.subr.mxu0 0.0
    %318 = vmatpush1.xpose.msra.mxu0 0.0
    %319 = vmatprep.subr.mxu0 0.0
    %320 = vmatpush1.xpose.msra.mxu0 0.0
    %321 = vmatprep.subr.mxu0 0.0
    %322 = vmatpush1.xpose.msra.mxu0 0.0
    %323 = vmatprep.subr.mxu0 0.0
    %324 = vmatpush1.xpose.msra.mxu0 0.0
    %325 = vmatprep.subr.mxu0 0.0
    %326 = vmatpush1.xpose.msra.mxu0 0.0
    %327 = vmatprep.subr.mxu0 0.0
    %328 = vmatpush1.xpose.msra.mxu0 0.0
    %329 = vmatprep.subr.mxu0 0.0
    %330 = vmatpush1.xpose.msra.mxu0 0.0
    %331 = vmatprep.subr.mxu0 0.0
    %332 = vmatpush1.xpose.msra.mxu0 0.0
    %333 = vmatprep.subr.mxu0 0.0
    %334 = vmatpush1.xpose.msra.mxu0 0.0
    %335 = vmatprep.subr.mxu0 0.0
    %336 = vmatpush1.xpose.msra.mxu0 0.0
    %337 = vmatprep.subr.mxu0 0.0
    %338 = vmatpush1.xpose.msra.mxu0 0.0
    %339 = vmatprep.subr.mxu0 0.0
    %340 = vmatpush1.xpose.msra.mxu0 0.0
    %341 = vmatprep.subr.mxu0 0.0
    %342 = vmatpush1.xpose.msra.mxu0 0.0
    %343 = vmatprep.subr.mxu0 0.0
    %344 = vmatpush1.xpose.msra.mxu0 0.0
    %345 = vmatprep.subr.mxu0 0.0
    %346 = vmatpush1.xpose.msra.mxu0 0.0
    %347 = vmatprep.mubr.f32.mxu0 0.0
    %348 = vmatmul.mubr.f32.gmra.mrb[0].mxu0 %v134
    %v349 = vpop.f32.mrb[0].mxu0
    %v350 = vadd.f32 0.0, %v349
    %v351 = vpop.f32.mrb[0].mxu0
    %352 = vdwg.mxu0
    %v353 = vlaneseq
    %v354 = vshrl.u32 %v353, 7
    %v355 = vlaneseq
    %v356 = vand.u32 %v355, 127
    %vm357 = vcmp.ge.s32.totalorder %v354, %v356
    %v358 = vsel %vm357, 1, 0
    %vm359 = vcmp.eq.s32.totalorder %v358, 1
    %v360 = vsel %vm359, %v280, -inf
    %v361 = vsel %vm359, %v350, -inf
    %vm362 = vcmask 64512
    %v363 = vsel %vm362, %v360, -inf
    %364 = vmax.xlane.f32.xlu0 %v363
    %v365 = vpop.xlane.xlu0 %364
    %v366 = vsel %vm362, %v361, -inf
    %367 = vmax.xlane.f32.xlu0 %v366
    %v368 = vpop.xlane.xlu0 %367
    %v369 = vsub.f32 %v360, %v365
    %v370 = vsub.f32 %v361, %v368
    %v371 = vmul.f32 %v369, 1.442695
    %v372 = vpow.pop %v371
    %v373 = vmul.f32 %v370, 1.442695
    %v374 = vpow.pop %v373
    %v375 = vsel %vm362, %v372, 0.0
    %376 = vadd.xlane.f32.xlu0 %v375
    %v377 = vpop.xlane.xlu0 %376
    %v378 = vsel %vm362, %v374, 0.0
    %379 = vadd.xlane.f32.xlu0 %v378
    %v380 = vpop.xlane.xlu0 %379
    %v381 = vrcp.pop %v377
    %v382 = vrcp.pop %v380
    %v383 = vmul.f32 %v372, %v381
    %v384 = vmul.f32 %v374, %v382
    %v386 = vsel %vm362, %v383, 0
    %388 = vmatprep.subr.mxu0 0.0
    %389 = vmatpush1.msra.mxu0 %v205
    %390 = vmatprep.subr.mxu0 0.0
    %391 = vmatpush1.msra.mxu0 0.0
    %392 = vmatprep.subr.mxu0 0.0
    %393 = vmatpush1.msra.mxu0 0.0
    %394 = vmatprep.subr.mxu0 0.0
    %395 = vmatpush1.msra.mxu0 0.0
    %396 = vmatprep.subr.mxu0 0.0
    %397 = vmatpush1.msra.mxu0 0.0
    %398 = vmatprep.subr.mxu0 0.0
    %399 = vmatpush1.msra.mxu0 0.0
    %400 = vmatprep.subr.mxu0 0.0
    %401 = vmatpush1.msra.mxu0 0.0
    %402 = vmatprep.subr.mxu0 0.0
    %403 = vmatpush1.msra.mxu0 0.0
    %404 = vmatprep.subr.mxu0 0.0
    %405 = vmatpush1.msra.mxu0 0.0
    %406 = vmatprep.subr.mxu0 0.0
    %407 = vmatpush1.msra.mxu0 0.0
    %408 = vmatprep.subr.mxu0 0.0
    %409 = vmatpush1.msra.mxu0 0.0
    %410 = vmatprep.subr.mxu0 0.0
    %411 = vmatpush1.msra.mxu0 0.0
    %412 = vmatprep.subr.mxu0 0.0
    %413 = vmatpush1.msra.mxu0 0.0
    %414 = vmatprep.subr.mxu0 0.0
    %415 = vmatpush1.msra.mxu0 0.0
    %416 = vmatprep.subr.mxu0 0.0
    %417 = vmatpush1.msra.mxu0 0.0
    %418 = vmatprep.subr.mxu0 0.0
    %419 = vmatpush1.msra.mxu0 0.0
    %420 = vmatprep.subr.mxu0 0.0
    %421 = vmatpush1.msra.mxu0 0.0
    %422 = vmatprep.subr.mxu0 0.0
    %423 = vmatpush1.msra.mxu0 0.0
    %424 = vmatprep.subr.mxu0 0.0
    %425 = vmatpush1.msra.mxu0 0.0
    %426 = vmatprep.subr.mxu0 0.0
    %427 = vmatpush1.msra.mxu0 0.0
    %428 = vmatprep.subr.mxu0 0.0
    %429 = vmatpush1.msra.mxu0 0.0
    %430 = vmatprep.subr.mxu0 0.0
    %431 = vmatpush1.msra.mxu0 0.0
    %432 = vmatprep.subr.mxu0 0.0
    %433 = vmatpush1.msra.mxu0 0.0
    %434 = vmatprep.subr.mxu0 0.0
    %435 = vmatpush1.msra.mxu0 0.0
    %436 = vmatprep.subr.mxu0 0.0
    %437 = vmatpush1.msra.mxu0 0.0
    %438 = vmatprep.subr.mxu0 0.0
    %439 = vmatpush1.msra.mxu0 0.0
    %440 = vmatprep.subr.mxu0 0.0
    %441 = vmatpush1.msra.mxu0 0.0
    %442 = vmatprep.subr.mxu0 0.0
    %443 = vmatpush1.msra.mxu0 0.0
    %444 = vmatprep.subr.mxu0 0.0
    %445 = vmatpush1.msra.mxu0 0.0
    %446 = vmatprep.subr.mxu0 0.0
    %447 = vmatpush1.msra.mxu0 0.0
    %448 = vmatprep.subr.mxu0 0.0
    %449 = vmatpush1.msra.mxu0 0.0
    %450 = vmatprep.subr.mxu0 0.0
    %451 = vmatpush1.msra.mxu0 0.0
    %452 = vmatprep.mubr.f32.mxu0 0.0
    %453 = vmatmul.mubr.f32.gmra.mrb[0].mxu0 %v386
    %v454 = vpop.f32.mrb[0].mxu0
    %v455 = vadd.f32 0.0, %v454
    %v456 = vpop.f32.mrb[0].mxu0
    %457 = vdwg.mxu0
    %v459 = vsel %vm362, %v384, 0
    %461 = vmatprep.subr.mxu0 0.0
    %462 = vmatpush1.msra.mxu0 %v210
    %463 = vmatprep.subr.mxu0 0.0
    %464 = vmatpush1.msra.mxu0 0.0
    %465 = vmatprep.subr.mxu0 0.0
    %466 = vmatpush1.msra.mxu0 0.0
    %467 = vmatprep.subr.mxu0 0.0
    %468 = vmatpush1.msra.mxu0 0.0
    %469 = vmatprep.subr.mxu0 0.0
    %470 = vmatpush1.msra.mxu0 0.0
    %471 = vmatprep.subr.mxu0 0.0
    %472 = vmatpush1.msra.mxu0 0.0
    %473 = vmatprep.subr.mxu0 0.0
    %474 = vmatpush1.msra.mxu0 0.0
    %475 = vmatprep.subr.mxu0 0.0
    %476 = vmatpush1.msra.mxu0 0.0
    %477 = vmatprep.subr.mxu0 0.0
    %478 = vmatpush1.msra.mxu0 0.0
    %479 = vmatprep.subr.mxu0 0.0
    %480 = vmatpush1.msra.mxu0 0.0
    %481 = vmatprep.subr.mxu0 0.0
    %482 = vmatpush1.msra.mxu0 0.0
    %483 = vmatprep.subr.mxu0 0.0
    %484 = vmatpush1.msra.mxu0 0.0
    %485 = vmatprep.subr.mxu0 0.0
    %486 = vmatpush1.msra.mxu0 0.0
    %487 = vmatprep.subr.mxu0 0.0
    %488 = vmatpush1.msra.mxu0 0.0
    %489 = vmatprep.subr.mxu0 0.0
    %490 = vmatpush1.msra.mxu0 0.0
    %491 = vmatprep.subr.mxu0 0.0
    %492 = vmatpush1.msra.mxu0 0.0
    %493 = vmatprep.subr.mxu0 0.0
    %494 = vmatpush1.msra.mxu0 0.0
    %495 = vmatprep.subr.mxu0 0.0
    %496 = vmatpush1.msra.mxu0 0.0
    %497 = vmatprep.subr.mxu0 0.0
    %498 = vmatpush1.msra.mxu0 0.0
    %499 = vmatprep.subr.mxu0 0.0
    %500 = vmatpush1.msra.mxu0 0.0
    %501 = vmatprep.subr.mxu0 0.0
    %502 = vmatpush1.msra.mxu0 0.0
    %503 = vmatprep.subr.mxu0 0.0
    %504 = vmatpush1.msra.mxu0 0.0
    %505 = vmatprep.subr.mxu0 0.0
    %506 = vmatpush1.msra.mxu0 0.0
    %507 = vmatprep.subr.mxu0 0.0
    %508 = vmatpush1.msra.mxu0 0.0
    %509 = vmatprep.subr.mxu0 0.0
    %510 = vmatpush1.msra.mxu0 0.0
    %511 = vmatprep.subr.mxu0 0.0
    %512 = vmatpush1.msra.mxu0 0.0
    %513 = vmatprep.subr.mxu0 0.0
    %514 = vmatpush1.msra.mxu0 0.0
    %515 = vmatprep.subr.mxu0 0.0
    %516 = vmatpush1.msra.mxu0 0.0
    %517 = vmatprep.subr.mxu0 0.0
    %518 = vmatpush1.msra.mxu0 0.0
    %519 = vmatprep.subr.mxu0 0.0
    %520 = vmatpush1.msra.mxu0 0.0
    %521 = vmatprep.subr.mxu0 0.0
    %522 = vmatpush1.msra.mxu0 0.0
    %523 = vmatprep.subr.mxu0 0.0
    %524 = vmatpush1.msra.mxu0 0.0
    %525 = vmatprep.mubr.f32.mxu0 0.0
    %526 = vmatmul.mubr.f32.gmra.mrb[0].mxu0 %v459
    %v527 = vpop.f32.mrb[0].mxu0
    %v528 = vadd.f32 0.0, %v527
    %v529 = vpop.f32.mrb[0].mxu0
    %530 = vdwg.mxu0
    %531 = vst [vmem:[#allocation7] sm:$0xff] %v455
    %532 = vst [vmem:[#allocation7 + $0x8] sm:$0xff] %v528
    // Predicated region
    $region18: #{tpu_custom_call.1} parent=1 // pred_check
      _
    $region19: #{tpu_custom_call.1} parent=1 // pred_check_branch
      %534 = sbr.rel (0) target = $region21
    $region20: #{tpu_custom_call.1} parent=1 // pred_region
      %s536 = ssub.s32 256, 256
      %537 = vsyncadd [#allocation4], %s536
      %s538 = sshll.u32 [#allocation7], 4
      %s539 = int_to_ptr.vmem [resolvable:$true] %s538
      %544 = dma.vmem_to_hbm [thread:$0]  %s539, 256, %s2, [#allocation4], 128, 128, 8
    $region21: #{tpu_custom_call.1} parent=1 // pred_fallthru
      _
    // Predicated region
    $region22: #{tpu_custom_call.1} parent=1 // pred_check
      _
    $region23: #{tpu_custom_call.1} parent=1 // pred_check_branch
      %546 = sbr.rel (0) target = $region25
    $region24: #{tpu_custom_call.1} parent=1 // pred_region
      %547 = dma.done [#allocation4], 256
    $region25: #{tpu_custom_call.1} parent=1 // pred_fallthru
      _
    %548 = vsyncpa [#allocation3], 1
    %549 = vsyncpa [#allocation6], 1
    %550 = vsyncpa [#allocation4], 1

</llo_original>
